<compile_context>
chip_gen: v7x
topology: tpu7x:2x2x1
jax: 0.10.0
libtpu: 0.0.40
codegen_flags: <defaults>
</compile_context>

<pallas_src>
import jax
import jax.numpy as jnp
from jax import lax
from jax.experimental import pallas as pl
from jax.experimental.pallas import tpu as pltpu


def _gelu_exact(x):
    # torch.nn.GELU() default: 0.5 * x * (1 + erf(x / sqrt(2)))
    return 0.5 * x * (1.0 + lax.erf(x * 0.7071067811865476))


def _round_up(x, m):
    return (x + m - 1) // m * m


_CHUNK = 128        # lane width: tile_b must be a multiple of this
_MAX_TILE = 4096    # rows per tile; (H, TILE_B) f32 intermediate stays ~2 MB


def _choose_tiling(B):
    """Pick (tile_b, b_pad): tile_b % 128 == 0, minimal padding, >=2 tiles when possible."""
    n = -(-B // _CHUNK)  # number of 128-row chunks
    if n <= 1:
        return _CHUNK, _CHUNK
    # Ensure at least 2 tiles (v7x megacore) and tile_b <= _MAX_TILE.
    max_tc = min(_MAX_TILE // _CHUNK, (n + 1) // 2)
    best = None
    for tc in range(max_tc, 0, -1):
        num_tiles = -(-n // tc)
        pad_chunks = num_tiles * tc - n
        key = (pad_chunks, -tc)          # minimize padding, then prefer fat tiles
        if best is None or key < best[0]:
            best = (key, tc * _CHUNK, num_tiles * tc * _CHUNK)
    return best[1], best[2]


def qnet_kernel(xt_ref, w1t_ref, b1_ref, w2_ref, b2_ref, o_ref):
    # xt:(Din,TB)  w1t:(H,Din)  b1:(H,1)  w2:(1,H)  b2:(1,1)  o:(1,TB)
    # Layer 1: single fused K=Din matmul; batch (TB) lands on the lane axis.
    h = jnp.dot(w1t_ref[...], xt_ref[...], preferred_element_type=jnp.float32)  # (H, TB)
    h = _gelu_exact(h + b1_ref[...].astype(jnp.float32))

    # Layer 2: (1,H) @ (H,TB) -> (1,TB): lane-dense, unmasked stores.
    q = jnp.dot(w2_ref[...].astype(jnp.float32), h, preferred_element_type=jnp.float32)
    o_ref[...] = (q + b2_ref[...].astype(jnp.float32)).astype(o_ref.dtype)


@jax.jit
def qnet_forward(states, actions, w1, b1, w2, b2):
    """states: (B, nstates); actions: (B,) or (B, action_dim).

    w1: (Din, H), b1: (H,), w2: (H, 1) or (H,), b2: (1,)  with Din = nstates+action_dim.
    Returns: (B,) float32
    """
    if actions.ndim == 1:
        actions = actions[:, None]
    B, ns = states.shape
    ad = actions.shape[1]
    din, H = w1.shape
    assert din == ns + ad

    # Lane-dense, pre-fused input: (Din, B) with batch on the lane axis.
    xt = jnp.concatenate([states.T, actions.T], axis=0)       # (Din, B)

    w1t = w1.T                                                 # (H, Din) - resident
    b1_col = b1.reshape(H, 1)                                  # (H, 1)   - resident
    w2_row = w2.reshape(1, H)                                  # (1, H)   - resident
    b2_2d = b2.reshape(1, 1)                                   # (1, 1)   - resident

    tile_b, b_pad = _choose_tiling(B)
    if b_pad != B:
        xt = jnp.pad(xt, ((0, 0), (0, b_pad - B)))
    num_tiles = b_pad // tile_b

    cost = pl.CostEstimate(
        flops=2 * b_pad * H * (din + 1) + 8 * b_pad * H,
        transcendentals=b_pad * H,
        bytes_accessed=xt.dtype.itemsize * din * b_pad
        + 4 * ((din + 2) * H + 1 + b_pad),
    )

    out = pl.pallas_call(
        qnet_kernel,
        out_shape=jax.ShapeDtypeStruct((1, b_pad), jnp.float32),
        grid_spec=pltpu.PrefetchScalarGridSpec(
            num_scalar_prefetch=0,
            grid=(num_tiles,),
            in_specs=[
                pl.BlockSpec((din, tile_b), lambda i: (0, i)),  # xT tile (lane-dense)
                pl.BlockSpec((H, din), lambda i: (0, 0)),       # W1^T     (resident)
                pl.BlockSpec((H, 1), lambda i: (0, 0)),         # b1 col   (resident)
                pl.BlockSpec((1, H), lambda i: (0, 0)),         # w2 row   (resident)
                pl.BlockSpec((1, 1), lambda i: (0, 0)),         # b2       (resident)
            ],
            out_specs=pl.BlockSpec((1, tile_b), lambda i: (0, i)),
        ),
        compiler_params=pltpu.CompilerParams(
            dimension_semantics=("parallel",),
        ),
        cost_estimate=cost,
    )(xt, w1t, b1_col, w2_row, b2_2d)

    return out[0, :B]


def init_params(key, nstates=3, action_dim=1, hidden_dim=128):
    """Deterministic init mimicking nn.Linear's U(-1/sqrt(fan_in), 1/sqrt(fan_in))."""
    din = nstates + action_dim
    k1, k2, k3, k4 = jax.random.split(key, 4)
    bound1 = 1.0 / jnp.sqrt(din)
    bound2 = 1.0 / jnp.sqrt(hidden_dim)
    # Stored pre-transposed relative to torch: w1 (Din, H), w2 (H, 1)
    w1 = jax.random.uniform(k1, (din, hidden_dim), jnp.float32, -bound1, bound1)
    b1 = jax.random.uniform(k2, (hidden_dim,), jnp.float32, -bound1, bound1)
    w2 = jax.random.uniform(k3, (hidden_dim, 1), jnp.float32, -bound2, bound2)
    b2 = jax.random.uniform(k4, (1,), jnp.float32, -bound2, bound2)
    return w1, b1, w2, b2


if __name__ == "__main__":
    key = jax.random.PRNGKey(0)
    k_params, k_states, k_actions = jax.random.split(key, 3)

    nstates, action_dim, hidden_dim = 3, 1, 128
    B = 8

    w1, b1, w2, b2 = init_params(k_params, nstates, action_dim, hidden_dim)

    states = jax.random.normal(k_states, (B, nstates), jnp.float32)
    actions = jax.random.normal(k_actions, (B,), jnp.float32)  # 1-D -> unsqueezed inside

    out = qnet_forward(states, actions, w1, b1, w2, b2)
    out = jax.block_until_ready(out)

    # Pure-JAX reference (matches the torch module semantics).
    x_ref = jnp.concatenate([states, actions[:, None]], axis=-1)
    h_ref = x_ref @ w1 + b1
    h_ref = 0.5 * h_ref * (1.0 + lax.erf(h_ref / jnp.sqrt(2.0)))
    ref = (h_ref @ w2 + b2)[:, 0]
    assert out.shape == (B,)
    assert jnp.allclose(out, ref, atol=1e-5, rtol=1e-5)

    print("KERNEL_OK")
</pallas_src>

<mosaic_0001>
module attributes {stable_mosaic.version = 11 : i64} {
  func.func @qnet_kernel(%arg0: i32, %arg1: memref<4x128xf32, #tpu.memory_space<vmem>>, %arg2: memref<128x4xf32, #tpu.memory_space<vmem>>, %arg3: memref<128x1xf32, #tpu.memory_space<vmem>>, %arg4: memref<1x128xf32, #tpu.memory_space<vmem>>, %arg5: memref<1x1xf32, #tpu.memory_space<vmem>>, %arg6: memref<1x128xf32, #tpu.memory_space<vmem>>) attributes {dimension_semantics = [#tpu.dimension_semantics<parallel>], iteration_bounds = array<i64: 1>, scalar_prefetch = 0 : i64, scratch_operands = 0 : i64, tpu.core_type = #tpu.core_type<tc>, window_params = [{transform_indices = @transform_0, window_bounds = array<i64: 4, 128>}, {pipeline_mode = #tpu.pipeline_mode<synchronous>, transform_indices = @transform_1, window_bounds = array<i64: 128, 4>}, {pipeline_mode = #tpu.pipeline_mode<synchronous>, transform_indices = @transform_2, window_bounds = array<i64: 128, 1>}, {pipeline_mode = #tpu.pipeline_mode<synchronous>, transform_indices = @transform_3, window_bounds = array<i64: 1, 128>}, {pipeline_mode = #tpu.pipeline_mode<synchronous>, transform_indices = @transform_4, window_bounds = array<i64: 1, 1>}, {transform_indices = @transform_5, window_bounds = array<i64: 1, 128>}]} {
    %c0 = arith.constant 0 : index
    %c0_0 = arith.constant 0 : index
    %0 = vector.load %arg2[%c0, %c0_0] : memref<128x4xf32, #tpu.memory_space<vmem>>, vector<128x4xf32>
    %c0_1 = arith.constant 0 : index
    %c0_2 = arith.constant 0 : index
    %1 = vector.load %arg1[%c0_1, %c0_2] : memref<4x128xf32, #tpu.memory_space<vmem>>, vector<4x128xf32>
    %cst = arith.constant dense<0.000000e+00> : vector<128x128xf32>
    %2 = tpu.matmul %0, %1, %cst {dimension_numbers = #tpu.dot_dimension_numbers<[1], [0], [0], [1], [0, 0, 1, 1], [], []>} : vector<128x4xf32>, vector<4x128xf32>, vector<128x128xf32> -> vector<128x128xf32>
    %c0_3 = arith.constant 0 : index
    %c0_4 = arith.constant 0 : index
    %3 = vector.load %arg3[%c0_3, %c0_4] : memref<128x1xf32, #tpu.memory_space<vmem>>, vector<128x1xf32>
    %4 = vector.broadcast %3 : vector<128x1xf32> to vector<128x128xf32>
    %5 = arith.addf %2, %4 : vector<128x128xf32>
    %cst_5 = arith.constant 5.000000e-01 : f32
    %6 = vector.broadcast %cst_5 : f32 to vector<128x128xf32>
    %7 = arith.mulf %6, %5 : vector<128x128xf32>
    %cst_6 = arith.constant 0.707106769 : f32
    %8 = vector.broadcast %cst_6 : f32 to vector<128x128xf32>
    %9 = arith.mulf %5, %8 : vector<128x128xf32>
    %10 = math.erf %9 : vector<128x128xf32>
    %cst_7 = arith.constant 1.000000e+00 : f32
    %11 = vector.broadcast %cst_7 : f32 to vector<128x128xf32>
    %12 = arith.addf %11, %10 : vector<128x128xf32>
    %13 = arith.mulf %7, %12 : vector<128x128xf32>
    %c0_8 = arith.constant 0 : index
    %c0_9 = arith.constant 0 : index
    %14 = vector.load %arg4[%c0_8, %c0_9] : memref<1x128xf32, #tpu.memory_space<vmem>>, vector<1x128xf32>
    %cst_10 = arith.constant dense<0.000000e+00> : vector<1x128xf32>
    %15 = tpu.matmul %14, %13, %cst_10 {dimension_numbers = #tpu.dot_dimension_numbers<[1], [0], [0], [1], [0, 0, 1, 1], [], []>} : vector<1x128xf32>, vector<128x128xf32>, vector<1x128xf32> -> vector<1x128xf32>
    %c0_11 = arith.constant 0 : index
    %c0_12 = arith.constant 0 : index
    %16 = vector.load %arg5[%c0_11, %c0_12] : memref<1x1xf32, #tpu.memory_space<vmem>>, vector<1x1xf32>
    %17 = vector.broadcast %16 : vector<1x1xf32> to vector<1x128xf32>
    %18 = arith.addf %15, %17 : vector<1x128xf32>
    %c0_13 = arith.constant 0 : index
    %c0_14 = arith.constant 0 : index
    %19 = vector.load %arg6[%c0_13, %c0_14] : memref<1x128xf32, #tpu.memory_space<vmem>>, vector<1x128xf32>
    tpu.vector_store %arg6[%c0_13, %c0_14], %18 {strides = array<i32>} : memref<1x128xf32, #tpu.memory_space<vmem>>, vector<1x128xf32>,
    return
  }
  func.func @transform_0(%arg0: i32) -> (i32, i32) {
    %c0_i32 = arith.constant 0 : i32
    %c0_i32_0 = arith.constant 0 : i32
    return %c0_i32, %arg0 : i32, i32
  }
  func.func @transform_1(%arg0: i32) -> (i32, i32) {
    %c0_i32 = arith.constant 0 : i32
    %c0_i32_0 = arith.constant 0 : i32
    %c0_i32_1 = arith.constant 0 : i32
    return %c0_i32, %c0_i32_0 : i32, i32
  }
  func.func @transform_2(%arg0: i32) -> (i32, i32) {
    %c0_i32 = arith.constant 0 : i32
    %c0_i32_0 = arith.constant 0 : i32
    %c0_i32_1 = arith.constant 0 : i32
    return %c0_i32, %c0_i32_0 : i32, i32
  }
  func.func @transform_3(%arg0: i32) -> (i32, i32) {
    %c0_i32 = arith.constant 0 : i32
    %c0_i32_0 = arith.constant 0 : i32
    %c0_i32_1 = arith.constant 0 : i32
    return %c0_i32, %c0_i32_0 : i32, i32
  }
  func.func @transform_4(%arg0: i32) -> (i32, i32) {
    %c0_i32 = arith.constant 0 : i32
    %c0_i32_0 = arith.constant 0 : i32
    %c0_i32_1 = arith.constant 0 : i32
    return %c0_i32, %c0_i32_0 : i32, i32
  }
  func.func @transform_5(%arg0: i32) -> (i32, i32) {
    %c0_i32 = arith.constant 0 : i32
    %c0_i32_0 = arith.constant 0 : i32
    return %c0_i32, %arg0 : i32, i32
  }
}

</mosaic_0001>

<llo_original>
// kernel: qnet_forward.1
$region0: #{qnet_forward.1}
  #allocation0 [shape = 'u32[]', space=smem, size = 0x4, offset = 0x4, fixed_abs, tag = 'smem constant byte address 0x4 - core index']
  #allocation1 [shape = 'u32[144,128]{1,0:T(1,128)}', space=vmem, size = 0x12000, scoped, tag = 'internal scratch']
  #allocation2 [shape = 'f32[1,1]{1,0:T(1,128)S(1)}', space=vmem, size = 0x200, scoped, tag = 'scoped memory for qnet_forward.1']
  %s0 = inlined_call_operand.vmem [shape: f32[4,128], index: 0, kind: input, shape index: {}]
  %s1 = inlined_call_operand.vmem [shape: f32[128,4], index: 1, kind: input, shape index: {}]
  %s2 = inlined_call_operand.vmem [shape: f32[128,1], index: 2, kind: input, shape index: {}]
  %s3 = inlined_call_operand.vmem [shape: f32[1,128], index: 3, kind: input, shape index: {}]
  %s4 = inlined_call_operand.<no memory space> [shape: f32[1,1], index: 4, kind: input, shape index: {}]
  %s5 = inlined_call_operand.vmem [shape: f32[1,128], index: 5, kind: output, shape index: {}]
  %s6 = sld [smem:[#allocation0]]
  $region30: #{qnet_forward.1} parent=0
    _
  %s8 = ssub.s32 1, %s6
  %s9 = scalar_select 0, %s8, %s6
  %v10 = vstv %s4
  %11 = vst [vmem:[#allocation2] sm:$0x1] %v10
  // Predicated region
  $region2: #{qnet_forward.1} parent=0 // pred_check
    _
  $region3: #{qnet_forward.1} parent=0 // pred_check_branch
    %13 = sbr.rel (0) target = $region5
  $region4: #{qnet_forward.1} parent=0 // pred_region
    _
  $region5: #{qnet_forward.1} parent=0 // pred_fallthru
    _
  // Predicated region
  $region6: #{qnet_forward.1} parent=0 // pred_check
    _
  $region7: #{qnet_forward.1} parent=0 // pred_check_branch
    %15 = sbr.rel (0) target = $region9
  $region8: #{qnet_forward.1} parent=0 // pred_region
    _
  $region9: #{qnet_forward.1} parent=0 // pred_fallthru
    _
  // Predicated region
  $region10: #{qnet_forward.1} parent=0 // pred_check
    _
  $region11: #{qnet_forward.1} parent=0 // pred_check_branch
    %17 = sbr.rel (0) target = $region13
  $region12: #{qnet_forward.1} parent=0 // pred_region
    _
  $region13: #{qnet_forward.1} parent=0 // pred_fallthru
    _
  // Predicated region
  $region14: #{qnet_forward.1} parent=0 // pred_check
    _
  $region15: #{qnet_forward.1} parent=0 // pred_check_branch
    %19 = sbr.rel (0) target = $region17
  $region16: #{qnet_forward.1} parent=0 // pred_region
    _
  $region17: #{qnet_forward.1} parent=0 // pred_fallthru
    _
  // Predicated region
  $region18: #{qnet_forward.1} parent=0 // pred_check
    _
  $region19: #{qnet_forward.1} parent=0 // pred_check_branch
    %21 = sbr.rel (0) target = $region21
  $region20: #{qnet_forward.1} parent=0 // pred_region
    _
  $region21: #{qnet_forward.1} parent=0 // pred_fallthru
    _
  %v22 = vld [vmem:[%s1] sm:$0xff]
  %v23 = vld [vmem:[%s1 + $0x8] sm:$0xff]
  %v24 = vld [vmem:[%s1 + $0x10] sm:$0xff]
  %v25 = vld [vmem:[%s1 + $0x18] sm:$0xff]
  %v26 = vld [vmem:[%s1 + $0x20] sm:$0xff]
  %v27 = vld [vmem:[%s1 + $0x28] sm:$0xff]
  %v28 = vld [vmem:[%s1 + $0x30] sm:$0xff]
  %v29 = vld [vmem:[%s1 + $0x38] sm:$0xff]
  %v30 = vld [vmem:[%s1 + $0x40] sm:$0xff]
  %v31 = vld [vmem:[%s1 + $0x48] sm:$0xff]
  %v32 = vld [vmem:[%s1 + $0x50] sm:$0xff]
  %v33 = vld [vmem:[%s1 + $0x58] sm:$0xff]
  %v34 = vld [vmem:[%s1 + $0x60] sm:$0xff]
  %v35 = vld [vmem:[%s1 + $0x68] sm:$0xff]
  %v36 = vld [vmem:[%s1 + $0x70] sm:$0xff]
  %v37 = vld [vmem:[%s1 + $0x78] sm:$0xff]
  %v38 = vld [vmem:[%s0] sm:$0xf]
  %v39 = vld [vmem:[%s2] sm:$0xff]
  %v40 = vld [vmem:[%s2 + $0x8] sm:$0xff]
  %v41 = vld [vmem:[%s2 + $0x10] sm:$0xff]
  %v42 = vld [vmem:[%s2 + $0x18] sm:$0xff]
  %v43 = vld [vmem:[%s2 + $0x20] sm:$0xff]
  %v44 = vld [vmem:[%s2 + $0x28] sm:$0xff]
  %v45 = vld [vmem:[%s2 + $0x30] sm:$0xff]
  %v46 = vld [vmem:[%s2 + $0x38] sm:$0xff]
  %v47 = vld [vmem:[%s2 + $0x40] sm:$0xff]
  %v48 = vld [vmem:[%s2 + $0x48] sm:$0xff]
  %v49 = vld [vmem:[%s2 + $0x50] sm:$0xff]
  %v50 = vld [vmem:[%s2 + $0x58] sm:$0xff]
  %v51 = vld [vmem:[%s2 + $0x60] sm:$0xff]
  %v52 = vld [vmem:[%s2 + $0x68] sm:$0xff]
  %v53 = vld [vmem:[%s2 + $0x70] sm:$0xff]
  %v54 = vld [vmem:[%s2 + $0x78] sm:$0xff]
  %56 = vset.pattern.permute.xlu0 0
  %57 = vperm.xlu0 %56, %v39
  %v58 = vpop.permute.xlu0 %57
  %61 = vset.pattern.permute.xlu0 0
  %62 = vperm.xlu0 %61, %v40
  %v63 = vpop.permute.xlu0 %62
  %66 = vset.pattern.permute.xlu0 0
  %67 = vperm.xlu0 %66, %v41
  %v68 = vpop.permute.xlu0 %67
  %71 = vset.pattern.permute.xlu0 0
  %72 = vperm.xlu0 %71, %v42
  %v73 = vpop.permute.xlu0 %72
  %76 = vset.pattern.permute.xlu0 0
  %77 = vperm.xlu0 %76, %v43
  %v78 = vpop.permute.xlu0 %77
  %81 = vset.pattern.permute.xlu0 0
  %82 = vperm.xlu0 %81, %v44
  %v83 = vpop.permute.xlu0 %82
  %86 = vset.pattern.permute.xlu0 0
  %87 = vperm.xlu0 %86, %v45
  %v88 = vpop.permute.xlu0 %87
  %91 = vset.pattern.permute.xlu0 0
  %92 = vperm.xlu0 %91, %v46
  %v93 = vpop.permute.xlu0 %92
  %96 = vset.pattern.permute.xlu0 0
  %97 = vperm.xlu0 %96, %v47
  %v98 = vpop.permute.xlu0 %97
  %101 = vset.pattern.permute.xlu0 0
  %102 = vperm.xlu0 %101, %v48
  %v103 = vpop.permute.xlu0 %102
  %106 = vset.pattern.permute.xlu0 0
  %107 = vperm.xlu0 %106, %v49
  %v108 = vpop.permute.xlu0 %107
  %111 = vset.pattern.permute.xlu0 0
  %112 = vperm.xlu0 %111, %v50
  %v113 = vpop.permute.xlu0 %112
  %116 = vset.pattern.permute.xlu0 0
  %117 = vperm.xlu0 %116, %v51
  %v118 = vpop.permute.xlu0 %117
  %121 = vset.pattern.permute.xlu0 0
  %122 = vperm.xlu0 %121, %v52
  %v123 = vpop.permute.xlu0 %122
  %126 = vset.pattern.permute.xlu0 0
  %127 = vperm.xlu0 %126, %v53
  %v128 = vpop.permute.xlu0 %127
  %131 = vset.pattern.permute.xlu0 0
  %132 = vperm.xlu0 %131, %v54
  %v133 = vpop.permute.xlu0 %132
  %vm135 = vcmask 31744
  %v137 = vsel %vm135, %v22, 0
  %v140 = vsel %vm135, %v23, 0
  %v143 = vsel %vm135, %v24, 0
  %v146 = vsel %vm135, %v25, 0
  %v149 = vsel %vm135, %v26, 0
  %v152 = vsel %vm135, %v27, 0
  %v155 = vsel %vm135, %v28, 0
  %v158 = vsel %vm135, %v29, 0
  %v161 = vsel %vm135, %v30, 0
  %v164 = vsel %vm135, %v31, 0
  %v167 = vsel %vm135, %v32, 0
  %v170 = vsel %vm135, %v33, 0
  %v173 = vsel %vm135, %v34, 0
  %v176 = vsel %vm135, %v35, 0
  %v179 = vsel %vm135, %v36, 0
  %v182 = vsel %vm135, %v37, 0
  %vm184 = vcmask 1043456
  %v186 = vsel %vm184, %v38, 0
  %188 = vmatprep.subr.mxu0 0.0
  %189 = vmatpush1.msra.mxu0 %v186
  %190 = vmatprep.subr.mxu0 0.0
  %191 = vmatpush1.msra.mxu0 0.0
  %192 = vmatprep.subr.mxu0 0.0
  %193 = vmatpush1.msra.mxu0 0.0
  %194 = vmatprep.subr.mxu0 0.0
  %195 = vmatpush1.msra.mxu0 0.0
  %196 = vmatprep.subr.mxu0 0.0
  %197 = vmatpush1.msra.mxu0 0.0
  %198 = vmatprep.subr.mxu0 0.0
  %199 = vmatpush1.msra.mxu0 0.0
  %200 = vmatprep.subr.mxu0 0.0
  %201 = vmatpush1.msra.mxu0 0.0
  %202 = vmatprep.subr.mxu0 0.0
  %203 = vmatpush1.msra.mxu0 0.0
  %204 = vmatprep.subr.mxu0 0.0
  %205 = vmatpush1.msra.mxu0 0.0
  %206 = vmatprep.subr.mxu0 0.0
  %207 = vmatpush1.msra.mxu0 0.0
  %208 = vmatprep.subr.mxu0 0.0
  %209 = vmatpush1.msra.mxu0 0.0
  %210 = vmatprep.subr.mxu0 0.0
  %211 = vmatpush1.msra.mxu0 0.0
  %212 = vmatprep.subr.mxu0 0.0
  %213 = vmatpush1.msra.mxu0 0.0
  %214 = vmatprep.subr.mxu0 0.0
  %215 = vmatpush1.msra.mxu0 0.0
  %216 = vmatprep.subr.mxu0 0.0
  %217 = vmatpush1.msra.mxu0 0.0
  %218 = vmatprep.subr.mxu0 0.0
  %219 = vmatpush1.msra.mxu0 0.0
  %220 = vmatprep.subr.mxu0 0.0
  %221 = vmatpush1.msra.mxu0 0.0
  %222 = vmatprep.subr.mxu0 0.0
  %223 = vmatpush1.msra.mxu0 0.0
  %224 = vmatprep.subr.mxu0 0.0
  %225 = vmatpush1.msra.mxu0 0.0
  %226 = vmatprep.subr.mxu0 0.0
  %227 = vmatpush1.msra.mxu0 0.0
  %228 = vmatprep.subr.mxu0 0.0
  %229 = vmatpush1.msra.mxu0 0.0
  %230 = vmatprep.subr.mxu0 0.0
  %231 = vmatpush1.msra.mxu0 0.0
  %232 = vmatprep.subr.mxu0 0.0
  %233 = vmatpush1.msra.mxu0 0.0
  %234 = vmatprep.subr.mxu0 0.0
  %235 = vmatpush1.msra.mxu0 0.0
  %236 = vmatprep.subr.mxu0 0.0
  %237 = vmatpush1.msra.mxu0 0.0
  %238 = vmatprep.subr.mxu0 0.0
  %239 = vmatpush1.msra.mxu0 0.0
  %240 = vmatprep.subr.mxu0 0.0
  %241 = vmatpush1.msra.mxu0 0.0
  %242 = vmatprep.subr.mxu0 0.0
  %243 = vmatpush1.msra.mxu0 0.0
  %244 = vmatprep.subr.mxu0 0.0
  %245 = vmatpush1.msra.mxu0 0.0
  %246 = vmatprep.subr.mxu0 0.0
  %247 = vmatpush1.msra.mxu0 0.0
  %248 = vmatprep.subr.mxu0 0.0
  %249 = vmatpush1.msra.mxu0 0.0
  %250 = vmatprep.subr.mxu0 0.0
  %251 = vmatpush1.msra.mxu0 0.0
  %252 = vmatprep.mubr.f32.mxu0 0.0
  %253 = vmatmul.mubr.f32.gmra.mrb[0].mxu0 %v137
  %v254 = vpop.f32.mrb[0].mxu0
  %v255 = vadd.f32 %v58, %v254
  %v256 = vpop.f32.mrb[0].mxu0
  %257 = vmatprep.mubr.f32.mxu0 0.0
  %258 = vmatmul.mubr.f32.gmra.mrb[0].mxu0 %v140
  %v259 = vpop.f32.mrb[0].mxu0
  %v260 = vadd.f32 %v63, %v259
  %v261 = vpop.f32.mrb[0].mxu0
  %262 = vmatprep.mubr.f32.mxu0 0.0
  %263 = vmatmul.mubr.f32.gmra.mrb[0].mxu0 %v143
  %v264 = vpop.f32.mrb[0].mxu0
  %v265 = vadd.f32 %v68, %v264
  %v266 = vpop.f32.mrb[0].mxu0
  %267 = vmatprep.mubr.f32.mxu0 0.0
  %268 = vmatmul.mubr.f32.gmra.mrb[0].mxu0 %v146
  %v269 = vpop.f32.mrb[0].mxu0
  %v270 = vadd.f32 %v73, %v269
  %v271 = vpop.f32.mrb[0].mxu0
  %272 = vmatprep.mubr.f32.mxu0 0.0
  %273 = vmatmul.mubr.f32.gmra.mrb[0].mxu0 %v149
  %v274 = vpop.f32.mrb[0].mxu0
  %v275 = vadd.f32 %v78, %v274
  %v276 = vpop.f32.mrb[0].mxu0
  %277 = vmatprep.mubr.f32.mxu0 0.0
  %278 = vmatmul.mubr.f32.gmra.mrb[0].mxu0 %v152
  %v279 = vpop.f32.mrb[0].mxu0
  %v280 = vadd.f32 %v83, %v279
  %v281 = vpop.f32.mrb[0].mxu0
  %282 = vmatprep.mubr.f32.mxu0 0.0
  %283 = vmatmul.mubr.f32.gmra.mrb[0].mxu0 %v155
  %v284 = vpop.f32.mrb[0].mxu0
  %v285 = vadd.f32 %v88, %v284
  %v286 = vpop.f32.mrb[0].mxu0
  %287 = vmatprep.mubr.f32.mxu0 0.0
  %288 = vmatmul.mubr.f32.gmra.mrb[0].mxu0 %v158
  %v289 = vpop.f32.mrb[0].mxu0
  %v290 = vadd.f32 %v93, %v289
  %v291 = vpop.f32.mrb[0].mxu0
  %292 = vmatprep.mubr.f32.mxu0 0.0
  %293 = vmatmul.mubr.f32.gmra.mrb[0].mxu0 %v161
  %v294 = vpop.f32.mrb[0].mxu0
  %v295 = vadd.f32 %v98, %v294
  %v296 = vpop.f32.mrb[0].mxu0
  %297 = vmatprep.mubr.f32.mxu0 0.0
  %298 = vmatmul.mubr.f32.gmra.mrb[0].mxu0 %v164
  %v299 = vpop.f32.mrb[0].mxu0
  %v300 = vadd.f32 %v103, %v299
  %v301 = vpop.f32.mrb[0].mxu0
  %302 = vmatprep.mubr.f32.mxu0 0.0
  %303 = vmatmul.mubr.f32.gmra.mrb[0].mxu0 %v167
  %v304 = vpop.f32.mrb[0].mxu0
  %v305 = vadd.f32 %v108, %v304
  %v306 = vpop.f32.mrb[0].mxu0
  %307 = vmatprep.mubr.f32.mxu0 0.0
  %308 = vmatmul.mubr.f32.gmra.mrb[0].mxu0 %v170
  %v309 = vpop.f32.mrb[0].mxu0
  %v310 = vadd.f32 %v113, %v309
  %v311 = vpop.f32.mrb[0].mxu0
  %312 = vmatprep.mubr.f32.mxu0 0.0
  %313 = vmatmul.mubr.f32.gmra.mrb[0].mxu0 %v173
  %v314 = vpop.f32.mrb[0].mxu0
  %v315 = vadd.f32 %v118, %v314
  %v316 = vpop.f32.mrb[0].mxu0
  %317 = vmatprep.mubr.f32.mxu0 0.0
  %318 = vmatmul.mubr.f32.gmra.mrb[0].mxu0 %v176
  %v319 = vpop.f32.mrb[0].mxu0
  %v320 = vadd.f32 %v123, %v319
  %v321 = vpop.f32.mrb[0].mxu0
  %322 = vmatprep.mubr.f32.mxu0 0.0
  %323 = vmatmul.mubr.f32.gmra.mrb[0].mxu0 %v179
  %v324 = vpop.f32.mrb[0].mxu0
  %v325 = vadd.f32 %v128, %v324
  %v326 = vpop.f32.mrb[0].mxu0
  %327 = vmatprep.mubr.f32.mxu0 0.0
  %328 = vmatmul.mubr.f32.gmra.mrb[0].mxu0 %v182
  %v329 = vpop.f32.mrb[0].mxu0
  %v330 = vadd.f32 %v133, %v329
  %v331 = vpop.f32.mrb[0].mxu0
  %332 = vdwg.mxu0
  %v333 = vmul.f32 %v255, 0.5
  %v334 = vmul.f32 %v260, 0.5
  %v335 = vmul.f32 %v265, 0.5
  %v336 = vmul.f32 %v270, 0.5
  %v337 = vmul.f32 %v275, 0.5
  %v338 = vmul.f32 %v280, 0.5
  %v339 = vmul.f32 %v285, 0.5
  %v340 = vmul.f32 %v290, 0.5
  %v341 = vmul.f32 %v295, 0.5
  %v342 = vmul.f32 %v300, 0.5
  %v343 = vmul.f32 %v305, 0.5
  %v344 = vmul.f32 %v310, 0.5
  %v345 = vmul.f32 %v315, 0.5
  %v346 = vmul.f32 %v320, 0.5
  %v347 = vmul.f32 %v325, 0.5
  %v348 = vmul.f32 %v330, 0.5
  %v349 = vmul.f32 %v255, 0.70710677
  %v350 = vmul.f32 %v260, 0.70710677
  %v351 = vmul.f32 %v265, 0.70710677
  %v352 = vmul.f32 %v270, 0.70710677
  %v353 = vmul.f32 %v275, 0.70710677
  %v354 = vmul.f32 %v280, 0.70710677
  %v355 = vmul.f32 %v285, 0.70710677
  %v356 = vmul.f32 %v290, 0.70710677
  %v357 = vmul.f32 %v295, 0.70710677
  %v358 = vmul.f32 %v300, 0.70710677
  %v359 = vmul.f32 %v305, 0.70710677
  %v360 = vmul.f32 %v310, 0.70710677
  %v361 = vmul.f32 %v315, 0.70710677
  %v362 = vmul.f32 %v320, 0.70710677
  %v363 = vmul.f32 %v325, 0.70710677
  %v364 = vmul.f32 %v330, 0.70710677
  %v365 = verf.f32.pop %v349
  %v366 = verf.f32.pop %v350
  %v367 = verf.f32.pop %v351
  %v368 = verf.f32.pop %v352
  %v369 = verf.f32.pop %v353
  %v370 = verf.f32.pop %v354
  %v371 = verf.f32.pop %v355
  %v372 = verf.f32.pop %v356
  %v373 = verf.f32.pop %v357
  %v374 = verf.f32.pop %v358
  %v375 = verf.f32.pop %v359
  %v376 = verf.f32.pop %v360
  %v377 = verf.f32.pop %v361
  %v378 = verf.f32.pop %v362
  %v379 = verf.f32.pop %v363
  %v380 = verf.f32.pop %v364
  %v381 = vadd.f32 %v365, 1.0
  %v382 = vadd.f32 %v366, 1.0
  %v383 = vadd.f32 %v367, 1.0
  %v384 = vadd.f32 %v368, 1.0
  %v385 = vadd.f32 %v369, 1.0
  %v386 = vadd.f32 %v370, 1.0
  %v387 = vadd.f32 %v371, 1.0
  %v388 = vadd.f32 %v372, 1.0
  %v389 = vadd.f32 %v373, 1.0
  %v390 = vadd.f32 %v374, 1.0
  %v391 = vadd.f32 %v375, 1.0
  %v392 = vadd.f32 %v376, 1.0
  %v393 = vadd.f32 %v377, 1.0
  %v394 = vadd.f32 %v378, 1.0
  %v395 = vadd.f32 %v379, 1.0
  %v396 = vadd.f32 %v380, 1.0
  %v397 = vmul.f32 %v333, %v381
  %v398 = vmul.f32 %v334, %v382
  %v399 = vmul.f32 %v335, %v383
  %v400 = vmul.f32 %v336, %v384
  %v401 = vmul.f32 %v337, %v385
  %v402 = vmul.f32 %v338, %v386
  %v403 = vmul.f32 %v339, %v387
  %v404 = vmul.f32 %v340, %v388
  %v405 = vmul.f32 %v341, %v389
  %v406 = vmul.f32 %v342, %v390
  %v407 = vmul.f32 %v343, %v391
  %v408 = vmul.f32 %v344, %v392
  %v409 = vmul.f32 %v345, %v393
  %v410 = vmul.f32 %v346, %v394
  %v411 = vmul.f32 %v347, %v395
  %v412 = vmul.f32 %v348, %v396
  %v413 = vld [vmem:[%s3] sm:$0x1]
  %v414 = vld [vmem:[#allocation2] sm:$0x1]
  %416 = vset.pattern.permute.xlu0 0
  %417 = vperm.xlu0 %416, %v414
  %v418 = vpop.permute.xlu0 %417
  %v420 = vlaneseq
  %v421 = vshrl.u32 %v420, 7
  %v422 = vsub.s32 0, %v421
  %v423 = vrot.slane %v418, %v422
  %424 = vmatprep.subr.mxu0 0.0
  %425 = vmatpush1.msra.mxu0 %v397
  %426 = vmatprep.subr.mxu0 0.0
  %427 = vmatpush1.msra.mxu0 %v398
  %428 = vmatprep.subr.mxu0 0.0
  %429 = vmatpush1.msra.mxu0 %v399
  %430 = vmatprep.subr.mxu0 0.0
  %431 = vmatpush1.msra.mxu0 %v400
  %432 = vmatprep.subr.mxu0 0.0
  %433 = vmatpush1.msra.mxu0 %v401
  %434 = vmatprep.subr.mxu0 0.0
  %435 = vmatpush1.msra.mxu0 %v402
  %436 = vmatprep.subr.mxu0 0.0
  %437 = vmatpush1.msra.mxu0 %v403
  %438 = vmatprep.subr.mxu0 0.0
  %439 = vmatpush1.msra.mxu0 %v404
  %440 = vmatprep.subr.mxu0 0.0
  %441 = vmatpush1.msra.mxu0 %v405
  %442 = vmatprep.subr.mxu0 0.0
  %443 = vmatpush1.msra.mxu0 %v406
  %444 = vmatprep.subr.mxu0 0.0
  %445 = vmatpush1.msra.mxu0 %v407
  %446 = vmatprep.subr.mxu0 0.0
  %447 = vmatpush1.msra.mxu0 %v408
  %448 = vmatprep.subr.mxu0 0.0
  %449 = vmatpush1.msra.mxu0 %v409
  %450 = vmatprep.subr.mxu0 0.0
  %451 = vmatpush1.msra.mxu0 %v410
  %452 = vmatprep.subr.mxu0 0.0
  %453 = vmatpush1.msra.mxu0 %v411
  %454 = vmatprep.subr.mxu0 0.0
  %455 = vmatpush1.msra.mxu0 %v412
  %456 = vmatprep.subr.mxu0 0.0
  %457 = vmatpush1.msra.mxu0 0.0
  %458 = vmatprep.subr.mxu0 0.0
  %459 = vmatpush1.msra.mxu0 0.0
  %460 = vmatprep.subr.mxu0 0.0
  %461 = vmatpush1.msra.mxu0 0.0
  %462 = vmatprep.subr.mxu0 0.0
  %463 = vmatpush1.msra.mxu0 0.0
  %464 = vmatprep.subr.mxu0 0.0
  %465 = vmatpush1.msra.mxu0 0.0
  %466 = vmatprep.subr.mxu0 0.0
  %467 = vmatpush1.msra.mxu0 0.0
  %468 = vmatprep.subr.mxu0 0.0
  %469 = vmatpush1.msra.mxu0 0.0
  %470 = vmatprep.subr.mxu0 0.0
  %471 = vmatpush1.msra.mxu0 0.0
  %472 = vmatprep.subr.mxu0 0.0
  %473 = vmatpush1.msra.mxu0 0.0
  %474 = vmatprep.subr.mxu0 0.0
  %475 = vmatpush1.msra.mxu0 0.0
  %476 = vmatprep.subr.mxu0 0.0
  %477 = vmatpush1.msra.mxu0 0.0
  %478 = vmatprep.subr.mxu0 0.0
  %479 = vmatpush1.msra.mxu0 0.0
  %480 = vmatprep.subr.mxu0 0.0
  %481 = vmatpush1.msra.mxu0 0.0
  %482 = vmatprep.subr.mxu0 0.0
  %483 = vmatpush1.msra.mxu0 0.0
  %484 = vmatprep.subr.mxu0 0.0
  %485 = vmatpush1.msra.mxu0 0.0
  %486 = vmatprep.subr.mxu0 0.0
  %487 = vmatpush1.msra.mxu0 0.0
  %488 = vmatprep.mubr.f32.mxu0 0.0
  %489 = vmatmul.mubr.f32.gmra.mrb[0].mxu0 %v413
  %v490 = vpop.f32.mrb[0].mxu0
  %v491 = vadd.f32 %v423, %v490
  %v492 = vpop.f32.mrb[0].mxu0
  %493 = vdwg.mxu0
  %494 = vst [vmem:[%s5] sm:$0x1] %v491
  // Predicated region
  $region22: #{qnet_forward.1} parent=0 // pred_check
    _
  $region23: #{qnet_forward.1} parent=0 // pred_check_branch
    %496 = sbr.rel (0) target = $region25
  $region24: #{qnet_forward.1} parent=0 // pred_region
    _
  $region25: #{qnet_forward.1} parent=0 // pred_fallthru
    _
  // Predicated region
  $region26: #{qnet_forward.1} parent=0 // pred_check
    _
  $region27: #{qnet_forward.1} parent=0 // pred_check_branch
    %498 = sbr.rel (0) target = $region29
  $region28: #{qnet_forward.1} parent=0 // pred_region
    _
  $region29: #{qnet_forward.1} parent=0 // pred_fallthru
    _

</llo_original>
